<compile_context>
chip_gen: v7x
topology: tpu7x:2x2x1
jax: 0.10.0
libtpu: 0.0.40
codegen_flags: <defaults>
</compile_context>

<pallas_src>
import functools
import math

import jax
import jax.numpy as jnp
from jax import lax
from jax.experimental import pallas as pl
from jax.experimental.pallas import tpu as pltpu


def _round_up(x, m):
    return ((x + m - 1) // m) * m


def _pad2d(x, rows, cols):
    r, c = x.shape
    return jnp.pad(x, ((0, rows - r), (0, cols - c)))


# ----------------------------------------------------------------------------
# Fused kernel: stub CLIP encoders -> GCN branches -> blend / normalize / logits
# ----------------------------------------------------------------------------
def _gnnclip_fused_kernel(scal_ref,              # SMEM [4]: a_text, a_vis, logit_scale, 0
                          img_ref, w_img_ref,    # [Bp, Ki] bf16, [Ki, Cp] bf16
                          txt_ref, w_txt_ref,    # [Nr, Kt] bf16, [Kt, Cp] bf16
                          tx_ref, wtg_ref, tadj_ref, btg_ref,   # text GCN (bf16/bf16/bf16/f32)
                          ix_ref, wvg_ref, iadj_ref, bvg_ref,   # visual GCN
                          o_ref,                 # [Bp, NP] f32 (lane-dense, NP=128 mult)
                          tf_pad_ref,            # VMEM scratch [NP, Cp] f32
                          *, alpha, beta, n_rows):
    # ---- stub CLIP encoders: bf16 MXU operands, f32 accumulation -----------
    img_feat = jnp.dot(img_ref[...], w_img_ref[...],
                       preferred_element_type=jnp.float32)
    txt_feat = jnp.dot(txt_ref[...], w_txt_ref[...],
                       preferred_element_type=jnp.float32)

    # ---- GCN branch: PReLU(adj @ (x @ W) + bias), bf16 MXU / f32 acc --------
    def gcn(x, w, adj, bias, a):
        fts = jnp.dot(x, w, preferred_element_type=jnp.float32)
        out = jnp.dot(adj, fts.astype(jnp.bfloat16),
                      preferred_element_type=jnp.float32) + bias
        return jnp.where(out >= 0.0, out, a * out)

    tgnn = gcn(tx_ref[...], wtg_ref[...], tadj_ref[...], btg_ref[...],
               scal_ref[0])
    vgnn = gcn(ix_ref[...], wvg_ref[...], iadj_ref[...], bvg_ref[...],
               scal_ref[1])

    # ---- CLIP head: blend, L2-normalize (rsqrt on EUP), scaled similarity ---
    tg = beta * tgnn + (1.0 - beta) * vgnn
    tf = alpha * txt_feat + (1.0 - alpha) * tg

    eps = jnp.float32(1e-12)
    scale = jnp.exp(scal_ref[2])
    # fold exp(logit_scale) into the (small) image-feature normalization
    img_n = img_feat * (scale * lax.rsqrt(
        jnp.sum(img_feat * img_feat, axis=-1, keepdims=True) + eps))
    tf_n = tf * lax.rsqrt(jnp.sum(tf * tf, axis=-1, keepdims=True) + eps)

    # zero-pad tf_n rows to the 128-wide output lane dim (VMEM only, no HBM)
    tf_pad_ref[...] = jnp.zeros_like(tf_pad_ref)
    tf_pad_ref[0:n_rows, :] = tf_n

    # contract dim 1 of both operands -> no materialized transpose; the MXU
    # result feeds the lane-dense output store directly.
    o_ref[...] = lax.dot_general(img_n, tf_pad_ref[...],
                                 dimension_numbers=(((1,), (1,)), ((), ())),
                                 preferred_element_type=jnp.float32)


# ----------------------------------------------------------------------------
# Parameter construction (deterministic, mirrors the PyTorch __init__);
# kernel-side padding / bf16 casting of all weights is hoisted here.
# ----------------------------------------------------------------------------
def xavier_uniform(key, fan_in, fan_out):
    bound = math.sqrt(6.0 / (fan_in + fan_out))
    return jax.random.uniform(key, (fan_in, fan_out), jnp.float32,
                              minval=-bound, maxval=bound)


def build_params(key, img_flat_dim, text_in_dim, ctx_dim):
    ks = jax.random.split(key, 4)
    Cp = _round_up(ctx_dim, 128)
    Ki = _round_up(img_flat_dim, 128)
    Kt = _round_up(text_in_dim, 128)

    w_img = xavier_uniform(ks[0], img_flat_dim, ctx_dim)
    w_txt = xavier_uniform(ks[1], text_in_dim, ctx_dim)
    w_tg = xavier_uniform(ks[2], ctx_dim, ctx_dim)
    w_vg = xavier_uniform(ks[3], ctx_dim, ctx_dim)
    b_tg = jnp.zeros((1, ctx_dim), jnp.float32)
    b_vg = jnp.zeros((1, ctx_dim), jnp.float32)
    a_tg = jnp.float32(0.25)
    a_vg = jnp.float32(0.25)
    logit_scale = jnp.float32(math.log(1.0 / 0.07))   # CLIP init ln(1/0.07)

    return {
        # raw (unpadded) params, used by the pure-JAX reference
        "w_img_enc": w_img, "w_txt_enc": w_txt,
        "w_text_gnn": w_tg, "b_text_gnn": b_tg, "a_text_gnn": a_tg,
        "w_vis_gnn": w_vg, "b_vis_gnn": b_vg, "a_vis_gnn": a_vg,
        "logit_scale": logit_scale,
        # pre-padded / pre-cast kernel operands (loop-invariant, hoisted)
        "w_img_enc_p": _pad2d(w_img, Ki, Cp).astype(jnp.bfloat16),
        "w_txt_enc_p": _pad2d(w_txt, Kt, Cp).astype(jnp.bfloat16),
        "w_text_gnn_p": _pad2d(w_tg, Cp, Cp).astype(jnp.bfloat16),
        "w_vis_gnn_p": _pad2d(w_vg, Cp, Cp).astype(jnp.bfloat16),
        "b_text_gnn_p": _pad2d(b_tg, 1, Cp),
        "b_vis_gnn_p": _pad2d(b_vg, 1, Cp),
        # all in-kernel scalars in one SMEM block
        "scalars": jnp.stack([a_tg, a_vg, logit_scale, jnp.float32(0.0)]),
        # static padded dims
        "dims": (img_flat_dim, text_in_dim, ctx_dim, Ki, Kt, Cp),
    }


# ----------------------------------------------------------------------------
# GNNClip.forward(image)  — single fused pallas_call (no grid)
# ----------------------------------------------------------------------------
def gnnclip_forward(params, image, text_tokens, text_x, text_adj,
                    image_x, image_adj, alpha=0.6, beta=0.7):
    B = image.shape[0]
    N, ctx_dim = text_x.shape
    img_flat_dim, text_in_dim, _, Ki, Kt, Cp = params["dims"]

    # minimal sublane/lane padding: rows to 8, lane (contraction/feature)
    # dims to 128; only the OUTPUT lane dim is padded all the way to 128.
    Bp = _round_up(max(B, 8), 8)
    Nr = _round_up(max(N, 8), 8)
    NP = _round_up(Nr, 128)

    image_flat = image.reshape(B, -1).astype(jnp.float32)
    img_p = _pad2d(image_flat, Bp, Ki).astype(jnp.bfloat16)
    txt_p = _pad2d(text_tokens.astype(jnp.float32), Nr, Kt).astype(jnp.bfloat16)
    tx_p = _pad2d(text_x, Nr, Cp).astype(jnp.bfloat16)
    ix_p = _pad2d(image_x, Nr, Cp).astype(jnp.bfloat16)
    tadj_p = _pad2d(text_adj, Nr, Nr).astype(jnp.bfloat16)
    iadj_p = _pad2d(image_adj, Nr, Nr).astype(jnp.bfloat16)

    operands = (params["scalars"],
                img_p, params["w_img_enc_p"],
                txt_p, params["w_txt_enc_p"],
                tx_p, params["w_text_gnn_p"], tadj_p, params["b_text_gnn_p"],
                ix_p, params["w_vis_gnn_p"], iadj_p, params["b_vis_gnn_p"])

    def mm_flops(m, k, n):
        return 2 * m * k * n

    flops = (mm_flops(Bp, Ki, Cp) + mm_flops(Nr, Kt, Cp)
             + 2 * (mm_flops(Nr, Cp, Cp) + mm_flops(Nr, Nr, Cp))
             + mm_flops(Bp, Cp, NP))
    bytes_accessed = (sum(int(a.size) * a.dtype.itemsize for a in operands)
                      + Bp * NP * 4)
    # advisory only: rsqrt over (Bp,1)+(Nr,1) rows plus one exp
    cost = pl.CostEstimate(flops=flops, transcendentals=Bp + Nr + 1,
                           bytes_accessed=bytes_accessed)

    kernel = functools.partial(_gnnclip_fused_kernel,
                               alpha=alpha, beta=beta, n_rows=Nr)
    vmem_spec = pl.BlockSpec(memory_space=pltpu.MemorySpace.VMEM)

    logits_padded = pl.pallas_call(
        kernel,
        out_shape=jax.ShapeDtypeStruct((Bp, NP), jnp.float32),
        in_specs=[pl.BlockSpec(memory_space=pltpu.MemorySpace.SMEM)]
                 + [vmem_spec] * 12,
        out_specs=vmem_spec,
        scratch_shapes=[pltpu.VMEM((NP, Cp), jnp.float32)],
        cost_estimate=cost,
    )(*operands)

    # slice back to the unpadded [B, N] logits
    return logits_padded[:B, :N]


# ----------------------------------------------------------------------------
# Pure-JAX reference with matching numerics (bf16 MXU operands, f32 acc)
# ----------------------------------------------------------------------------
def _reference_forward(params, image, text_tokens, text_x, text_adj,
                       image_x, image_adj, alpha, beta):
    B = image.shape[0]
    img_flat = image.reshape(B, -1).astype(jnp.bfloat16)
    img_feat = jnp.dot(img_flat, params["w_img_enc"].astype(jnp.bfloat16),
                       preferred_element_type=jnp.float32)
    txt_feat = jnp.dot(text_tokens.astype(jnp.bfloat16),
                       params["w_txt_enc"].astype(jnp.bfloat16),
                       preferred_element_type=jnp.float32)

    def gcn(x, w, adj, bias, a):
        fts = jnp.dot(x.astype(jnp.bfloat16), w.astype(jnp.bfloat16),
                      preferred_element_type=jnp.float32)
        out = jnp.dot(adj.astype(jnp.bfloat16), fts.astype(jnp.bfloat16),
                      preferred_element_type=jnp.float32) + bias
        return jnp.where(out >= 0.0, out, a * out)

    tgnn = gcn(text_x, params["w_text_gnn"], text_adj,
               params["b_text_gnn"], params["a_text_gnn"])
    vgnn = gcn(image_x, params["w_vis_gnn"], image_adj,
               params["b_vis_gnn"], params["a_vis_gnn"])
    tg = beta * tgnn + (1.0 - beta) * vgnn
    tf = alpha * txt_feat + (1.0 - alpha) * tg
    img_n = img_feat / jnp.linalg.norm(img_feat, axis=-1, keepdims=True)
    tf_n = tf / jnp.linalg.norm(tf, axis=-1, keepdims=True)
    return jnp.exp(params["logit_scale"]) * (img_n @ tf_n.T)


# ----------------------------------------------------------------------------
# main
# ----------------------------------------------------------------------------
if __name__ == "__main__":
    key = jax.random.PRNGKey(0)

    B, C, H, W = 2, 3, 16, 16        # image batch (NCHW)
    N = 8                            # number of graph nodes / text classes
    ctx_dim = 64                     # ln_final width 32 -> ctx_dim = 2 * 32
    text_in_dim = 64                 # stubbed text-encoder input width

    k_img, k_txt, k_tx, k_ta, k_ix, k_ia, k_p = jax.random.split(key, 7)

    image = jax.random.normal(k_img, (B, C, H, W), jnp.float32)
    text_tokens = jax.random.normal(k_txt, (N, text_in_dim), jnp.float32)
    text_x = jax.random.normal(k_tx, (N, ctx_dim), jnp.float32)
    image_x = jax.random.normal(k_ix, (N, ctx_dim), jnp.float32)
    # row-normalized dense adjacency matrices
    text_adj = jax.nn.softmax(jax.random.normal(k_ta, (N, N), jnp.float32), -1)
    image_adj = jax.nn.softmax(jax.random.normal(k_ia, (N, N), jnp.float32), -1)

    params = build_params(k_p, C * H * W, text_in_dim, ctx_dim)

    logits_per_image = gnnclip_forward(params, image, text_tokens,
                                       text_x, text_adj, image_x, image_adj,
                                       alpha=0.6, beta=0.7)
    jax.block_until_ready(logits_per_image)
    assert logits_per_image.shape == (B, N)
    assert bool(jnp.all(jnp.isfinite(logits_per_image)))

    ref = _reference_forward(params, image, text_tokens, text_x, text_adj,
                             image_x, image_adj, 0.6, 0.7)
    assert jnp.allclose(logits_per_image, ref, rtol=1e-2, atol=2e-2), (
        logits_per_image, ref)

    print("KERNEL_OK")
</pallas_src>

<mosaic_0001>
module attributes {stable_mosaic.version = 11 : i64} {
  func.func @_gnnclip_fused_kernel(%arg0: memref<4xf32, #tpu.memory_space<smem>>, %arg1: memref<8x768xbf16, #tpu.memory_space<vmem>>, %arg2: memref<768x128xbf16, #tpu.memory_space<vmem>>, %arg3: memref<8x128xbf16, #tpu.memory_space<vmem>>, %arg4: memref<128x128xbf16, #tpu.memory_space<vmem>>, %arg5: memref<8x128xbf16, #tpu.memory_space<vmem>>, %arg6: memref<128x128xbf16, #tpu.memory_space<vmem>>, %arg7: memref<8x8xbf16, #tpu.memory_space<vmem>>, %arg8: memref<1x128xf32, #tpu.memory_space<vmem>>, %arg9: memref<8x128xbf16, #tpu.memory_space<vmem>>, %arg10: memref<128x128xbf16, #tpu.memory_space<vmem>>, %arg11: memref<8x8xbf16, #tpu.memory_space<vmem>>, %arg12: memref<1x128xf32, #tpu.memory_space<vmem>>, %arg13: memref<8x128xf32, #tpu.memory_space<vmem>>, %arg14: memref<128x128xf32, #tpu.memory_space<vmem>>) attributes {dimension_semantics = [], scalar_prefetch = 0 : i64, scratch_operands = 1 : i64, tpu.core_type = #tpu.core_type<tc>} {
    %c0 = arith.constant 0 : index
    %c0_0 = arith.constant 0 : index
    %0 = vector.load %arg1[%c0, %c0_0] : memref<8x768xbf16, #tpu.memory_space<vmem>>, vector<8x768xbf16>
    %c0_1 = arith.constant 0 : index
    %c0_2 = arith.constant 0 : index
    %1 = vector.load %arg2[%c0_1, %c0_2] : memref<768x128xbf16, #tpu.memory_space<vmem>>, vector<768x128xbf16>
    %cst = arith.constant dense<0.000000e+00> : vector<8x128xf32>
    %2 = tpu.matmul %0, %1, %cst {dimension_numbers = #tpu.dot_dimension_numbers<[1], [0], [0], [1], [0, 0, 1, 1], [], []>} : vector<8x768xbf16>, vector<768x128xbf16>, vector<8x128xf32> -> vector<8x128xf32>
    %c0_3 = arith.constant 0 : index
    %c0_4 = arith.constant 0 : index
    %3 = vector.load %arg3[%c0_3, %c0_4] : memref<8x128xbf16, #tpu.memory_space<vmem>>, vector<8x128xbf16>
    %c0_5 = arith.constant 0 : index
    %c0_6 = arith.constant 0 : index
    %4 = vector.load %arg4[%c0_5, %c0_6] : memref<128x128xbf16, #tpu.memory_space<vmem>>, vector<128x128xbf16>
    %cst_7 = arith.constant dense<0.000000e+00> : vector<8x128xf32>
    %5 = tpu.matmul %3, %4, %cst_7 {dimension_numbers = #tpu.dot_dimension_numbers<[1], [0], [0], [1], [0, 0, 1, 1], [], []>} : vector<8x128xbf16>, vector<128x128xbf16>, vector<8x128xf32> -> vector<8x128xf32>
    %c0_8 = arith.constant 0 : index
    %c0_9 = arith.constant 0 : index
    %6 = vector.load %arg5[%c0_8, %c0_9] : memref<8x128xbf16, #tpu.memory_space<vmem>>, vector<8x128xbf16>
    %c0_10 = arith.constant 0 : index
    %c0_11 = arith.constant 0 : index
    %7 = vector.load %arg6[%c0_10, %c0_11] : memref<128x128xbf16, #tpu.memory_space<vmem>>, vector<128x128xbf16>
    %c0_12 = arith.constant 0 : index
    %c0_13 = arith.constant 0 : index
    %8 = vector.load %arg7[%c0_12, %c0_13] : memref<8x8xbf16, #tpu.memory_space<vmem>>, vector<8x8xbf16>
    %c0_14 = arith.constant 0 : index
    %c0_15 = arith.constant 0 : index
    %9 = vector.load %arg8[%c0_14, %c0_15] : memref<1x128xf32, #tpu.memory_space<vmem>>, vector<1x128xf32>
    %c0_16 = arith.constant 0 : index
    %10 = memref.load %arg0[%c0_16] : memref<4xf32, #tpu.memory_space<smem>>
    %cst_17 = arith.constant dense<0.000000e+00> : vector<8x128xf32>
    %11 = tpu.matmul %6, %7, %cst_17 {dimension_numbers = #tpu.dot_dimension_numbers<[1], [0], [0], [1], [0, 0, 1, 1], [], []>} : vector<8x128xbf16>, vector<128x128xbf16>, vector<8x128xf32> -> vector<8x128xf32>
    %12 = arith.truncf %11 : vector<8x128xf32> to vector<8x128xbf16>
    %cst_18 = arith.constant dense<0.000000e+00> : vector<8x128xf32>
    %13 = tpu.matmul %8, %12, %cst_18 {dimension_numbers = #tpu.dot_dimension_numbers<[1], [0], [0], [1], [0, 0, 1, 1], [], []>} : vector<8x8xbf16>, vector<8x128xbf16>, vector<8x128xf32> -> vector<8x128xf32>
    %14 = vector.broadcast %9 : vector<1x128xf32> to vector<8x128xf32>
    %15 = arith.addf %13, %14 : vector<8x128xf32>
    %cst_19 = arith.constant 0.000000e+00 : f32
    %16 = vector.broadcast %cst_19 : f32 to vector<8x128xf32>
    %17 = arith.cmpf oge, %15, %16 : vector<8x128xf32>
    %18 = vector.broadcast %10 : f32 to vector<8x128xf32>
    %19 = arith.mulf %18, %15 : vector<8x128xf32>
    %20 = arith.select %17, %15, %19 : vector<8x128xi1>, vector<8x128xf32>
    %c0_20 = arith.constant 0 : index
    %c0_21 = arith.constant 0 : index
    %21 = vector.load %arg9[%c0_20, %c0_21] : memref<8x128xbf16, #tpu.memory_space<vmem>>, vector<8x128xbf16>
    %c0_22 = arith.constant 0 : index
    %c0_23 = arith.constant 0 : index
    %22 = vector.load %arg10[%c0_22, %c0_23] : memref<128x128xbf16, #tpu.memory_space<vmem>>, vector<128x128xbf16>
    %c0_24 = arith.constant 0 : index
    %c0_25 = arith.constant 0 : index
    %23 = vector.load %arg11[%c0_24, %c0_25] : memref<8x8xbf16, #tpu.memory_space<vmem>>, vector<8x8xbf16>
    %c0_26 = arith.constant 0 : index
    %c0_27 = arith.constant 0 : index
    %24 = vector.load %arg12[%c0_26, %c0_27] : memref<1x128xf32, #tpu.memory_space<vmem>>, vector<1x128xf32>
    %c1 = arith.constant 1 : index
    %25 = memref.load %arg0[%c1] : memref<4xf32, #tpu.memory_space<smem>>
    %cst_28 = arith.constant dense<0.000000e+00> : vector<8x128xf32>
    %26 = tpu.matmul %21, %22, %cst_28 {dimension_numbers = #tpu.dot_dimension_numbers<[1], [0], [0], [1], [0, 0, 1, 1], [], []>} : vector<8x128xbf16>, vector<128x128xbf16>, vector<8x128xf32> -> vector<8x128xf32>
    %27 = arith.truncf %26 : vector<8x128xf32> to vector<8x128xbf16>
    %cst_29 = arith.constant dense<0.000000e+00> : vector<8x128xf32>
    %28 = tpu.matmul %23, %27, %cst_29 {dimension_numbers = #tpu.dot_dimension_numbers<[1], [0], [0], [1], [0, 0, 1, 1], [], []>} : vector<8x8xbf16>, vector<8x128xbf16>, vector<8x128xf32> -> vector<8x128xf32>
    %29 = vector.broadcast %24 : vector<1x128xf32> to vector<8x128xf32>
    %30 = arith.addf %28, %29 : vector<8x128xf32>
    %cst_30 = arith.constant 0.000000e+00 : f32
    %31 = vector.broadcast %cst_30 : f32 to vector<8x128xf32>
    %32 = arith.cmpf oge, %30, %31 : vector<8x128xf32>
    %33 = vector.broadcast %25 : f32 to vector<8x128xf32>
    %34 = arith.mulf %33, %30 : vector<8x128xf32>
    %35 = arith.select %32, %30, %34 : vector<8x128xi1>, vector<8x128xf32>
    %cst_31 = arith.constant 0.699999988 : f32
    %36 = vector.broadcast %cst_31 : f32 to vector<8x128xf32>
    %37 = arith.mulf %36, %20 : vector<8x128xf32>
    %cst_32 = arith.constant 3.000000e-01 : f32
    %38 = vector.broadcast %cst_32 : f32 to vector<8x128xf32>
    %39 = arith.mulf %38, %35 : vector<8x128xf32>
    %40 = arith.addf %37, %39 : vector<8x128xf32>
    %cst_33 = arith.constant 6.000000e-01 : f32
    %41 = vector.broadcast %cst_33 : f32 to vector<8x128xf32>
    %42 = arith.mulf %41, %5 : vector<8x128xf32>
    %cst_34 = arith.constant 4.000000e-01 : f32
    %43 = vector.broadcast %cst_34 : f32 to vector<8x128xf32>
    %44 = arith.mulf %43, %40 : vector<8x128xf32>
    %45 = arith.addf %42, %44 : vector<8x128xf32>
    %c2 = arith.constant 2 : index
    %46 = memref.load %arg0[%c2] : memref<4xf32, #tpu.memory_space<smem>>
    %47 = math.exp %46 : f32
    %48 = arith.mulf %2, %2 : vector<8x128xf32>
    %cst_35 = arith.constant dense<0.000000e+00> : vector<8xf32>
    %49 = vector.multi_reduction <add>, %48, %cst_35 [1] : vector<8x128xf32> to vector<8xf32>
    %50 = vector.shape_cast %49 : vector<8xf32> to vector<8x1xf32>
    %cst_36 = arith.constant 9.99999996E-13 : f32
    %51 = vector.broadcast %cst_36 : f32 to vector<8x1xf32>
    %52 = arith.addf %50, %51 : vector<8x1xf32>
    %53 = math.rsqrt %52 : vector<8x1xf32>
    %54 = vector.broadcast %47 : f32 to vector<8x1xf32>
    %55 = arith.mulf %54, %53 : vector<8x1xf32>
    %56 = vector.broadcast %55 : vector<8x1xf32> to vector<8x128xf32>
    %57 = arith.mulf %2, %56 : vector<8x128xf32>
    %58 = arith.mulf %45, %45 : vector<8x128xf32>
    %cst_37 = arith.constant dense<0.000000e+00> : vector<8xf32>
    %59 = vector.multi_reduction <add>, %58, %cst_37 [1] : vector<8x128xf32> to vector<8xf32>
    %60 = vector.shape_cast %59 : vector<8xf32> to vector<8x1xf32>
    %cst_38 = arith.constant 9.99999996E-13 : f32
    %61 = vector.broadcast %cst_38 : f32 to vector<8x1xf32>
    %62 = arith.addf %60, %61 : vector<8x1xf32>
    %63 = math.rsqrt %62 : vector<8x1xf32>
    %64 = vector.broadcast %63 : vector<8x1xf32> to vector<8x128xf32>
    %65 = arith.mulf %45, %64 : vector<8x128xf32>
    %cst_39 = arith.constant 0.000000e+00 : f32
    %66 = vector.broadcast %cst_39 : f32 to vector<128x128xf32>
    %c0_40 = arith.constant 0 : index
    %c0_41 = arith.constant 0 : index
    %67 = vector.load %arg14[%c0_40, %c0_41] : memref<128x128xf32, #tpu.memory_space<vmem>>, vector<128x128xf32>
    tpu.vector_store %arg14[%c0_40, %c0_41], %66 {strides = array<i32>} : memref<128x128xf32, #tpu.memory_space<vmem>>, vector<128x128xf32>,
    %c0_42 = arith.constant 0 : index
    %c0_43 = arith.constant 0 : index
    %68 = vector.load %arg14[%c0_42, %c0_43] : memref<128x128xf32, #tpu.memory_space<vmem>>, vector<8x128xf32>
    tpu.vector_store %arg14[%c0_42, %c0_43], %65 {strides = array<i32>} : memref<128x128xf32, #tpu.memory_space<vmem>>, vector<8x128xf32>,
    %c0_44 = arith.constant 0 : index
    %c0_45 = arith.constant 0 : index
    %69 = vector.load %arg14[%c0_44, %c0_45] : memref<128x128xf32, #tpu.memory_space<vmem>>, vector<128x128xf32>
    %cst_46 = arith.constant dense<0.000000e+00> : vector<8x128xf32>
    %70 = tpu.matmul %57, %69, %cst_46 {dimension_numbers = #tpu.dot_dimension_numbers<[1], [1], [0], [0], [0, 0, 1, 0], [], []>} : vector<8x128xf32>, vector<128x128xf32>, vector<8x128xf32> -> vector<8x128xf32>
    %c0_47 = arith.constant 0 : index
    %c0_48 = arith.constant 0 : index
    %71 = vector.load %arg13[%c0_47, %c0_48] : memref<8x128xf32, #tpu.memory_space<vmem>>, vector<8x128xf32>
    tpu.vector_store %arg13[%c0_47, %c0_48], %70 {strides = array<i32>} : memref<8x128xf32, #tpu.memory_space<vmem>>, vector<8x128xf32>,
    return
  }
}

</mosaic_0001>

<llo_original>
// kernel: tpu_custom_call.1
$region0: #{tpu_custom_call.1}
  #allocation0 [shape = 'u32[]', space=smem, size = 0x4, offset = 0x4, fixed_abs, tag = 'smem constant byte address 0x4 - core index']
  #allocation1 [shape = 'u32[144,128]{1,0:T(1,128)}', space=vmem, size = 0x12000, scoped, tag = 'internal scratch']
  #allocation2 [shape = 'f32[128,128]{1,0:T(8,128)}', space=vmem, size = 0x10000, scoped, tag = 'scratch operand']
  %s0 = inlined_call_operand.hbm [shape: f32[4], index: 0, kind: input, shape index: {}]
  %s1 = inlined_call_operand.hbm [shape: bf16[8,768], index: 1, kind: input, shape index: {}]
  %s2 = inlined_call_operand.hbm [shape: bf16[768,128], index: 2, kind: input, shape index: {}]
  %s3 = inlined_call_operand.vmem [shape: bf16[8,128], index: 3, kind: input, shape index: {}]
  %s4 = inlined_call_operand.hbm [shape: bf16[128,128], index: 4, kind: input, shape index: {}]
  %s5 = inlined_call_operand.vmem [shape: bf16[8,128], index: 5, kind: input, shape index: {}]
  %s6 = inlined_call_operand.hbm [shape: bf16[128,128], index: 6, kind: input, shape index: {}]
  %s7 = inlined_call_operand.vmem [shape: bf16[8,8], index: 7, kind: input, shape index: {}]
  %s8 = inlined_call_operand.vmem [shape: f32[1,128], index: 8, kind: input, shape index: {}]
  %s9 = inlined_call_operand.vmem [shape: bf16[8,128], index: 9, kind: input, shape index: {}]
  %s10 = inlined_call_operand.hbm [shape: bf16[128,128], index: 10, kind: input, shape index: {}]
  %s11 = inlined_call_operand.vmem [shape: bf16[8,8], index: 11, kind: input, shape index: {}]
  %s12 = inlined_call_operand.vmem [shape: f32[1,128], index: 12, kind: input, shape index: {}]
  %s13 = inlined_call_operand.hbm [shape: f32[8,128], index: 13, kind: output, shape index: {}]
  %s14 = sld [smem:[#allocation0]]
  $region86: #{tpu_custom_call.1} parent=0
    _
  %s16 = ssub.s32 1, %s14
  %s17 = scalar_select 0, %s16, %s14
  $region1: #{tpu_custom_call.1} parent=0
    #allocation3 [shape = 'u8[512]{0}', space=smem, size = 0x200, scoped, tag = 'input window, operand 0, single buffered']
    #allocation4 [shape = 's32[1]{0}', space=sflag, size = 0x4, scoped, tag = 'scoped memory for tpu_custom_call.1']
    #allocation5 [shape = 's32[1]{0}', space=sflag, size = 0x4, scoped, tag = 'scoped memory for tpu_custom_call.1']
    #allocation6 [shape = 's32[1]{0}', space=sflag, size = 0x4, scoped, tag = 'scoped memory for tpu_custom_call.1']
    #allocation7 [shape = 'u8[12288]{0}', space=vmem, size = 0x3000, scoped, tag = 'input window, operand 1, single buffered']
    #allocation8 [shape = 'u8[196608]{0}', space=vmem, size = 0x30000, scoped, tag = 'input window, operand 2, single buffered']
    #allocation9 [shape = 's32[1]{0}', space=sflag, size = 0x4, scoped, tag = 'scoped memory for tpu_custom_call.1']
    #allocation10 [shape = 'u8[32768]{0}', space=vmem, size = 0x8000, scoped, tag = 'input window, operand 4, single buffered']
    #allocation11 [shape = 'u8[32768]{0}', space=vmem, size = 0x8000, scoped, tag = 'input window, operand 6, single buffered']
    #allocation12 [shape = 's32[1]{0}', space=sflag, size = 0x4, scoped, tag = 'scoped memory for tpu_custom_call.1']
    #allocation13 [shape = 'u8[32768]{0}', space=vmem, size = 0x8000, scoped, tag = 'input window, operand 10, single buffered']
    #allocation14 [shape = 'u8[4096]{0}', space=vmem, size = 0x1000, scoped, tag = 'output window, operand 0, single buffered']
    %18 = vsyncpa [#allocation6], 0
    %19 = vsyncpa [#allocation4], 0
    %20 = vsyncpa [#allocation9], 0
    %21 = vsyncpa [#allocation12], 0
    %22 = vsyncpa [#allocation5], 0
    // Predicated region
    $region2: #{tpu_custom_call.1} parent=1 // pred_check
      _
    $region3: #{tpu_custom_call.1} parent=1 // pred_check_branch
      %24 = sbr.rel (0) target = $region5
    $region4: #{tpu_custom_call.1} parent=1 // pred_region
      %s26 = ssub.s32 16, 16
      %27 = vsyncadd [#allocation6], %s26
      %30 = dma.hbm_to_smem %s0, 16, [#allocation3], [#allocation6]
    $region5: #{tpu_custom_call.1} parent=1 // pred_fallthru
      _
    // Predicated region
    $region6: #{tpu_custom_call.1} parent=1 // pred_check
      _
    $region7: #{tpu_custom_call.1} parent=1 // pred_check_branch
      %32 = sbr.rel (0) target = $region9
    $region8: #{tpu_custom_call.1} parent=1 // pred_region
      %s34 = ssub.s32 384, 384
      %35 = vsyncadd [#allocation4], %s34
      %s37 = sshll.u32 [#allocation7], 4
      %s38 = int_to_ptr.vmem [resolvable:$true] %s37
      %40 = dma.hbm_to_vmem [thread:$0]  %s1, 384, %s38, [#allocation4]
    $region9: #{tpu_custom_call.1} parent=1 // pred_fallthru
      _
    // Predicated region
    $region10: #{tpu_custom_call.1} parent=1 // pred_check
      _
    $region11: #{tpu_custom_call.1} parent=1 // pred_check_branch
      %42 = sbr.rel (0) target = $region13
    $region12: #{tpu_custom_call.1} parent=1 // pred_region
      %s44 = ssub.s32 6144, 6144
      %45 = vsyncadd [#allocation9], %s44
      %s46 = sshll.u32 [#allocation8], 4
      %s47 = int_to_ptr.vmem [resolvable:$true] %s46
      %52 = dma.hbm_to_vmem [thread:$0]  %s2, 6144, %s47, [#allocation9], 64, 64, 4
    $region13: #{tpu_custom_call.1} parent=1 // pred_fallthru
      _
    // Predicated region
    $region14: #{tpu_custom_call.1} parent=1 // pred_check
      _
    $region15: #{tpu_custom_call.1} parent=1 // pred_check_branch
      %54 = sbr.rel (0) target = $region17
    $region16: #{tpu_custom_call.1} parent=1 // pred_region
      _
    $region17: #{tpu_custom_call.1} parent=1 // pred_fallthru
      _
    // Predicated region
    $region18: #{tpu_custom_call.1} parent=1 // pred_check
      _
    $region19: #{tpu_custom_call.1} parent=1 // pred_check_branch
      %56 = sbr.rel (0) target = $region21
    $region20: #{tpu_custom_call.1} parent=1 // pred_region
      %s58 = ssub.s32 1024, 1024
      %59 = vsyncadd [#allocation9], %s58
      %s60 = sshll.u32 [#allocation10], 4
      %s61 = int_to_ptr.vmem [resolvable:$true] %s60
      %66 = dma.hbm_to_vmem [thread:$0]  %s4, 1024, %s61, [#allocation9], 64, 64, 4
    $region21: #{tpu_custom_call.1} parent=1 // pred_fallthru
      _
    // Predicated region
    $region22: #{tpu_custom_call.1} parent=1 // pred_check
      _
    $region23: #{tpu_custom_call.1} parent=1 // pred_check_branch
      %68 = sbr.rel (0) target = $region25
    $region24: #{tpu_custom_call.1} parent=1 // pred_region
      _
    $region25: #{tpu_custom_call.1} parent=1 // pred_fallthru
      _
    // Predicated region
    $region26: #{tpu_custom_call.1} parent=1 // pred_check
      _
    $region27: #{tpu_custom_call.1} parent=1 // pred_check_branch
      %70 = sbr.rel (0) target = $region29
    $region28: #{tpu_custom_call.1} parent=1 // pred_region
      %s72 = ssub.s32 1024, 1024
      %73 = vsyncadd [#allocation12], %s72
      %s74 = sshll.u32 [#allocation11], 4
      %s75 = int_to_ptr.vmem [resolvable:$true] %s74
      %80 = dma.hbm_to_vmem [thread:$0]  %s6, 1024, %s75, [#allocation12], 64, 64, 4
    $region29: #{tpu_custom_call.1} parent=1 // pred_fallthru
      _
    // Predicated region
    $region30: #{tpu_custom_call.1} parent=1 // pred_check
      _
    $region31: #{tpu_custom_call.1} parent=1 // pred_check_branch
      %82 = sbr.rel (0) target = $region33
    $region32: #{tpu_custom_call.1} parent=1 // pred_region
      _
    $region33: #{tpu_custom_call.1} parent=1 // pred_fallthru
      _
    // Predicated region
    $region34: #{tpu_custom_call.1} parent=1 // pred_check
      _
    $region35: #{tpu_custom_call.1} parent=1 // pred_check_branch
      %84 = sbr.rel (0) target = $region37
    $region36: #{tpu_custom_call.1} parent=1 // pred_region
      _
    $region37: #{tpu_custom_call.1} parent=1 // pred_fallthru
      _
    // Predicated region
    $region38: #{tpu_custom_call.1} parent=1 // pred_check
      _
    $region39: #{tpu_custom_call.1} parent=1 // pred_check_branch
      %86 = sbr.rel (0) target = $region41
    $region40: #{tpu_custom_call.1} parent=1 // pred_region
      _
    $region41: #{tpu_custom_call.1} parent=1 // pred_fallthru
      _
    // Predicated region
    $region42: #{tpu_custom_call.1} parent=1 // pred_check
      _
    $region43: #{tpu_custom_call.1} parent=1 // pred_check_branch
      %88 = sbr.rel (0) target = $region45
    $region44: #{tpu_custom_call.1} parent=1 // pred_region
      %s90 = ssub.s32 1024, 1024
      %91 = vsyncadd [#allocation12], %s90
      %s92 = sshll.u32 [#allocation13], 4
      %s93 = int_to_ptr.vmem [resolvable:$true] %s92
      %98 = dma.hbm_to_vmem [thread:$0]  %s10, 1024, %s93, [#allocation12], 64, 64, 4
    $region45: #{tpu_custom_call.1} parent=1 // pred_fallthru
      _
    // Predicated region
    $region46: #{tpu_custom_call.1} parent=1 // pred_check
      _
    $region47: #{tpu_custom_call.1} parent=1 // pred_check_branch
      %100 = sbr.rel (0) target = $region49
    $region48: #{tpu_custom_call.1} parent=1 // pred_region
      _
    $region49: #{tpu_custom_call.1} parent=1 // pred_fallthru
      _
    // Predicated region
    $region50: #{tpu_custom_call.1} parent=1 // pred_check
      _
    $region51: #{tpu_custom_call.1} parent=1 // pred_check_branch
      %102 = sbr.rel (0) target = $region53
    $region52: #{tpu_custom_call.1} parent=1 // pred_region
      _
    $region53: #{tpu_custom_call.1} parent=1 // pred_fallthru
      _
    // Predicated region
    $region54: #{tpu_custom_call.1} parent=1 // pred_check
      _
    $region55: #{tpu_custom_call.1} parent=1 // pred_check_branch
      %104 = sbr.rel (0) target = $region57
    $region56: #{tpu_custom_call.1} parent=1 // pred_region
      %105 = dma.done [#allocation6], 16
    $region57: #{tpu_custom_call.1} parent=1 // pred_fallthru
      _
    // Predicated region
    $region58: #{tpu_custom_call.1} parent=1 // pred_check
      _
    $region59: #{tpu_custom_call.1} parent=1 // pred_check_branch
      %107 = sbr.rel (0) target = $region61
    $region60: #{tpu_custom_call.1} parent=1 // pred_region
      %108 = dma.done [#allocation4], 384
    $region61: #{tpu_custom_call.1} parent=1 // pred_fallthru
      _
    // Predicated region
    $region62: #{tpu_custom_call.1} parent=1 // pred_check
      _
    $region63: #{tpu_custom_call.1} parent=1 // pred_check_branch
      %110 = sbr.rel (0) target = $region65
    $region64: #{tpu_custom_call.1} parent=1 // pred_region
      %111 = dma.done [#allocation9], 6144
    $region65: #{tpu_custom_call.1} parent=1 // pred_fallthru
      _
    // Predicated region
    $region66: #{tpu_custom_call.1} parent=1 // pred_check
      _
    $region67: #{tpu_custom_call.1} parent=1 // pred_check_branch
      %113 = sbr.rel (0) target = $region69
    $region68: #{tpu_custom_call.1} parent=1 // pred_region
      %114 = dma.done [#allocation9], 1024
    $region69: #{tpu_custom_call.1} parent=1 // pred_fallthru
      _
    // Predicated region
    $region70: #{tpu_custom_call.1} parent=1 // pred_check
      _
    $region71: #{tpu_custom_call.1} parent=1 // pred_check_branch
      %116 = sbr.rel (0) target = $region73
    $region72: #{tpu_custom_call.1} parent=1 // pred_region
      %117 = dma.done [#allocation12], 1024
    $region73: #{tpu_custom_call.1} parent=1 // pred_fallthru
      _
    // Predicated region
    $region74: #{tpu_custom_call.1} parent=1 // pred_check
      _
    $region75: #{tpu_custom_call.1} parent=1 // pred_check_branch
      %119 = sbr.rel (0) target = $region77
    $region76: #{tpu_custom_call.1} parent=1 // pred_region
      %120 = dma.done [#allocation12], 1024
    $region77: #{tpu_custom_call.1} parent=1 // pred_fallthru
      _
    %121 = sfence
    %v123 = vld [vmem:[#allocation7] sm:$0xff]
    %v124 = vld [vmem:[#allocation7 + $0x8] sm:$0xff]
    %v125 = vld [vmem:[#allocation7 + $0x10] sm:$0xff]
    %v126 = vld [vmem:[#allocation8] sm:$0xf]
    %v127 = vld [vmem:[#allocation8 + $0x4] sm:$0xf]
    %v128 = vld [vmem:[#allocation8 + $0x8] sm:$0xf]
    %v129 = vld [vmem:[#allocation8 + $0xc] sm:$0xf]
    %v130 = vld [vmem:[#allocation8 + $0x10] sm:$0xf]
    %v131 = vld [vmem:[#allocation8 + $0x14] sm:$0xf]
    %v132 = vld [vmem:[#allocation8 + $0x18] sm:$0xf]
    %v133 = vld [vmem:[#allocation8 + $0x1c] sm:$0xf]
    %v134 = vld [vmem:[#allocation8 + $0x20] sm:$0xf]
    %v135 = vld [vmem:[#allocation8 + $0x24] sm:$0xf]
    %v136 = vld [vmem:[#allocation8 + $0x28] sm:$0xf]
    %v137 = vld [vmem:[#allocation8 + $0x2c] sm:$0xf]
    %v138 = vld [vmem:[#allocation8 + $0x30] sm:$0xf]
    %v139 = vld [vmem:[#allocation8 + $0x34] sm:$0xf]
    %v140 = vld [vmem:[#allocation8 + $0x38] sm:$0xf]
    %v141 = vld [vmem:[#allocation8 + $0x3c] sm:$0xf]
    %v142 = vld [vmem:[#allocation8 + $0x40] sm:$0xf]
    %v143 = vld [vmem:[#allocation8 + $0x44] sm:$0xf]
    %v144 = vld [vmem:[#allocation8 + $0x48] sm:$0xf]
    %v145 = vld [vmem:[#allocation8 + $0x4c] sm:$0xf]
    %v146 = vld [vmem:[#allocation8 + $0x50] sm:$0xf]
    %v147 = vld [vmem:[#allocation8 + $0x54] sm:$0xf]
    %v148 = vld [vmem:[#allocation8 + $0x58] sm:$0xf]
    %v149 = vld [vmem:[#allocation8 + $0x5c] sm:$0xf]
    %v150 = vld [vmem:[#allocation8 + $0x60] sm:$0xf]
    %v151 = vld [vmem:[#allocation8 + $0x64] sm:$0xf]
    %v152 = vld [vmem:[#allocation8 + $0x68] sm:$0xf]
    %v153 = vld [vmem:[#allocation8 + $0x6c] sm:$0xf]
    %v154 = vld [vmem:[#allocation8 + $0x70] sm:$0xf]
    %v155 = vld [vmem:[#allocation8 + $0x74] sm:$0xf]
    %v156 = vld [vmem:[#allocation8 + $0x78] sm:$0xf]
    %v157 = vld [vmem:[#allocation8 + $0x7c] sm:$0xf]
    %v158 = vld [vmem:[#allocation8 + $0x80] sm:$0xf]
    %v159 = vld [vmem:[#allocation8 + $0x84] sm:$0xf]
    %v160 = vld [vmem:[#allocation8 + $0x88] sm:$0xf]
    %v161 = vld [vmem:[#allocation8 + $0x8c] sm:$0xf]
    %v162 = vld [vmem:[#allocation8 + $0x90] sm:$0xf]
    %v163 = vld [vmem:[#allocation8 + $0x94] sm:$0xf]
    %v164 = vld [vmem:[#allocation8 + $0x98] sm:$0xf]
    %v165 = vld [vmem:[#allocation8 + $0x9c] sm:$0xf]
    %v166 = vld [vmem:[#allocation8 + $0xa0] sm:$0xf]
    %v167 = vld [vmem:[#allocation8 + $0xa4] sm:$0xf]
    %v168 = vld [vmem:[#allocation8 + $0xa8] sm:$0xf]
    %v169 = vld [vmem:[#allocation8 + $0xac] sm:$0xf]
    %v170 = vld [vmem:[#allocation8 + $0xb0] sm:$0xf]
    %v171 = vld [vmem:[#allocation8 + $0xb4] sm:$0xf]
    %v172 = vld [vmem:[#allocation8 + $0xb8] sm:$0xf]
    %v173 = vld [vmem:[#allocation8 + $0xbc] sm:$0xf]
    %v174 = vld [vmem:[#allocation8 + $0xc0] sm:$0xf]
    %v175 = vld [vmem:[#allocation8 + $0xc4] sm:$0xf]
    %v176 = vld [vmem:[#allocation8 + $0xc8] sm:$0xf]
    %v177 = vld [vmem:[#allocation8 + $0xcc] sm:$0xf]
    %v178 = vld [vmem:[#allocation8 + $0xd0] sm:$0xf]
    %v179 = vld [vmem:[#allocation8 + $0xd4] sm:$0xf]
    %v180 = vld [vmem:[#allocation8 + $0xd8] sm:$0xf]
    %v181 = vld [vmem:[#allocation8 + $0xdc] sm:$0xf]
    %v182 = vld [vmem:[#allocation8 + $0xe0] sm:$0xf]
    %v183 = vld [vmem:[#allocation8 + $0xe4] sm:$0xf]
    %v184 = vld [vmem:[#allocation8 + $0xe8] sm:$0xf]
    %v185 = vld [vmem:[#allocation8 + $0xec] sm:$0xf]
    %v186 = vld [vmem:[#allocation8 + $0xf0] sm:$0xf]
    %v187 = vld [vmem:[#allocation8 + $0xf4] sm:$0xf]
    %v188 = vld [vmem:[#allocation8 + $0xf8] sm:$0xf]
    %v189 = vld [vmem:[#allocation8 + $0xfc] sm:$0xf]
    %v190 = vld [vmem:[#allocation8 + $0x100] sm:$0xf]
    %v191 = vld [vmem:[#allocation8 + $0x104] sm:$0xf]
    %v192 = vld [vmem:[#allocation8 + $0x108] sm:$0xf]
    %v193 = vld [vmem:[#allocation8 + $0x10c] sm:$0xf]
    %v194 = vld [vmem:[#allocation8 + $0x110] sm:$0xf]
    %v195 = vld [vmem:[#allocation8 + $0x114] sm:$0xf]
    %v196 = vld [vmem:[#allocation8 + $0x118] sm:$0xf]
    %v197 = vld [vmem:[#allocation8 + $0x11c] sm:$0xf]
    %v198 = vld [vmem:[#allocation8 + $0x120] sm:$0xf]
    %v199 = vld [vmem:[#allocation8 + $0x124] sm:$0xf]
    %v200 = vld [vmem:[#allocation8 + $0x128] sm:$0xf]
    %v201 = vld [vmem:[#allocation8 + $0x12c] sm:$0xf]
    %v202 = vld [vmem:[#allocation8 + $0x130] sm:$0xf]
    %v203 = vld [vmem:[#allocation8 + $0x134] sm:$0xf]
    %v204 = vld [vmem:[#allocation8 + $0x138] sm:$0xf]
    %v205 = vld [vmem:[#allocation8 + $0x13c] sm:$0xf]
    %v206 = vld [vmem:[#allocation8 + $0x140] sm:$0xf]
    %v207 = vld [vmem:[#allocation8 + $0x144] sm:$0xf]
    %v208 = vld [vmem:[#allocation8 + $0x148] sm:$0xf]
    %v209 = vld [vmem:[#allocation8 + $0x14c] sm:$0xf]
    %v210 = vld [vmem:[#allocation8 + $0x150] sm:$0xf]
    %v211 = vld [vmem:[#allocation8 + $0x154] sm:$0xf]
    %v212 = vld [vmem:[#allocation8 + $0x158] sm:$0xf]
    %v213 = vld [vmem:[#allocation8 + $0x15c] sm:$0xf]
    %v214 = vld [vmem:[#allocation8 + $0x160] sm:$0xf]
    %v215 = vld [vmem:[#allocation8 + $0x164] sm:$0xf]
    %v216 = vld [vmem:[#allocation8 + $0x168] sm:$0xf]
    %v217 = vld [vmem:[#allocation8 + $0x16c] sm:$0xf]
    %v218 = vld [vmem:[#allocation8 + $0x170] sm:$0xf]
    %v219 = vld [vmem:[#allocation8 + $0x174] sm:$0xf]
    %v220 = vld [vmem:[#allocation8 + $0x178] sm:$0xf]
    %v221 = vld [vmem:[#allocation8 + $0x17c] sm:$0xf]
    %v225 = vunpack.c.l.b16 %v123
    %v226 = vunpack.c.h.b16 %v123
    %v227 = vunpack.c.l.b16 %v124
    %v228 = vunpack.c.h.b16 %v124
    %v229 = vunpack.c.l.b16 %v125
    %v230 = vunpack.c.h.b16 %v125
    %v231 = vpack.c.b16 %v225, %v225
    %v232 = vpack.c.b16 %v226, %v226
    %v233 = vpack.c.b16 %v227, %v227
    %v234 = vpack.c.b16 %v228, %v228
    %v235 = vpack.c.b16 %v229, %v229
    %v236 = vpack.c.b16 %v230, %v230
    %v339 = vunpack.c.l.b16 %v126
    %v340 = vunpack.c.l.b16 %v127
    %v341 = vunpack.c.l.b16 %v128
    %v342 = vunpack.c.l.b16 %v129
    %v343 = vunpack.c.l.b16 %v130
    %v344 = vunpack.c.l.b16 %v131
    %v345 = vunpack.c.l.b16 %v132
    %v346 = vunpack.c.l.b16 %v133
    %v347 = vunpack.c.l.b16 %v134
    %v348 = vunpack.c.l.b16 %v135
    %v349 = vunpack.c.l.b16 %v136
    %v350 = vunpack.c.l.b16 %v137
    %v351 = vunpack.c.l.b16 %v138
    %v352 = vunpack.c.l.b16 %v139
    %v353 = vunpack.c.l.b16 %v140
    %v354 = vunpack.c.l.b16 %v141
    %v355 = vunpack.c.l.b16 %v142
    %v356 = vunpack.c.l.b16 %v143
    %v357 = vunpack.c.l.b16 %v144
    %v358 = vunpack.c.l.b16 %v145
    %v359 = vunpack.c.l.b16 %v146
    %v360 = vunpack.c.l.b16 %v147
    %v361 = vunpack.c.l.b16 %v148
    %v362 = vunpack.c.l.b16 %v149
    %v363 = vunpack.c.l.b16 %v150
    %v364 = vunpack.c.l.b16 %v151
    %v365 = vunpack.c.l.b16 %v152
    %v366 = vunpack.c.l.b16 %v153
    %v367 = vunpack.c.l.b16 %v154
    %v368 = vunpack.c.l.b16 %v155
    %v369 = vunpack.c.l.b16 %v156
    %v370 = vunpack.c.l.b16 %v157
    %v371 = vunpack.c.l.b16 %v158
    %v372 = vunpack.c.l.b16 %v159
    %v373 = vunpack.c.l.b16 %v160
    %v374 = vunpack.c.l.b16 %v161
    %v375 = vunpack.c.l.b16 %v162
    %v376 = vunpack.c.l.b16 %v163
    %v377 = vunpack.c.l.b16 %v164
    %v378 = vunpack.c.l.b16 %v165
    %v379 = vunpack.c.l.b16 %v166
    %v380 = vunpack.c.l.b16 %v167
    %v381 = vunpack.c.l.b16 %v168
    %v382 = vunpack.c.l.b16 %v169
    %v383 = vunpack.c.l.b16 %v170
    %v384 = vunpack.c.l.b16 %v171
    %v385 = vunpack.c.l.b16 %v172
    %v386 = vunpack.c.l.b16 %v173
    %v387 = vunpack.c.l.b16 %v174
    %v388 = vunpack.c.l.b16 %v175
    %v389 = vunpack.c.l.b16 %v176
    %v390 = vunpack.c.l.b16 %v177
    %v391 = vunpack.c.l.b16 %v178
    %v392 = vunpack.c.l.b16 %v179
    %v393 = vunpack.c.l.b16 %v180
    %v394 = vunpack.c.l.b16 %v181
    %v395 = vunpack.c.l.b16 %v182
    %v396 = vunpack.c.l.b16 %v183
    %v397 = vunpack.c.l.b16 %v184
    %v398 = vunpack.c.l.b16 %v185
    %v399 = vunpack.c.l.b16 %v186
    %v400 = vunpack.c.l.b16 %v187
    %v401 = vunpack.c.l.b16 %v188
    %v402 = vunpack.c.l.b16 %v189
    %v403 = vunpack.c.l.b16 %v190
    %v404 = vunpack.c.l.b16 %v191
    %v405 = vunpack.c.l.b16 %v192
    %v406 = vunpack.c.l.b16 %v193
    %v407 = vunpack.c.l.b16 %v194
    %v408 = vunpack.c.l.b16 %v195
    %v409 = vunpack.c.l.b16 %v196
    %v410 = vunpack.c.l.b16 %v197
    %v411 = vunpack.c.l.b16 %v198
    %v412 = vunpack.c.l.b16 %v199
    %v413 = vunpack.c.l.b16 %v200
    %v414 = vunpack.c.l.b16 %v201
    %v415 = vunpack.c.l.b16 %v202
    %v416 = vunpack.c.l.b16 %v203
    %v417 = vunpack.c.l.b16 %v204
    %v418 = vunpack.c.l.b16 %v205
    %v419 = vunpack.c.l.b16 %v206
    %v420 = vunpack.c.l.b16 %v207
    %v421 = vunpack.c.l.b16 %v208
    %v422 = vunpack.c.l.b16 %v209
    %v423 = vunpack.c.l.b16 %v210
    %v424 = vunpack.c.l.b16 %v211
    %v425 = vunpack.c.l.b16 %v212
    %v426 = vunpack.c.l.b16 %v213
    %v427 = vunpack.c.l.b16 %v214
    %v428 = vunpack.c.l.b16 %v215
    %v429 = vunpack.c.l.b16 %v216
    %v430 = vunpack.c.l.b16 %v217
    %v431 = vunpack.c.l.b16 %v218
    %v432 = vunpack.c.l.b16 %v219
    %v433 = vunpack.c.l.b16 %v220
    %v434 = vunpack.c.l.b16 %v221
    %v435 = vpack.c.b16 %v340, %v339
    %v436 = vpack.c.b16 %v342, %v341
    %v437 = vpack.c.b16 %v344, %v343
    %v438 = vpack.c.b16 %v346, %v345
    %v439 = vpack.c.b16 %v348, %v347
    %v440 = vpack.c.b16 %v350, %v349
    %v441 = vpack.c.b16 %v352, %v351
    %v442 = vpack.c.b16 %v354, %v353
    %v443 = vpack.c.b16 %v356, %v355
    %v444 = vpack.c.b16 %v358, %v357
    %v445 = vpack.c.b16 %v360, %v359
    %v446 = vpack.c.b16 %v362, %v361
    %v447 = vpack.c.b16 %v364, %v363
    %v448 = vpack.c.b16 %v366, %v365
    %v449 = vpack.c.b16 %v368, %v367
    %v450 = vpack.c.b16 %v370, %v369
    %v451 = vpack.c.b16 %v372, %v371
    %v452 = vpack.c.b16 %v374, %v373
    %v453 = vpack.c.b16 %v376, %v375
    %v454 = vpack.c.b16 %v378, %v377
    %v455 = vpack.c.b16 %v380, %v379
    %v456 = vpack.c.b16 %v382, %v381
    %v457 = vpack.c.b16 %v384, %v383
    %v458 = vpack.c.b16 %v386, %v385
    %v459 = vpack.c.b16 %v388, %v387
    %v460 = vpack.c.b16 %v390, %v389
    %v461 = vpack.c.b16 %v392, %v391
    %v462 = vpack.c.b16 %v394, %v393
    %v463 = vpack.c.b16 %v396, %v395
    %v464 = vpack.c.b16 %v398, %v397
    %v465 = vpack.c.b16 %v400, %v399
    %v466 = vpack.c.b16 %v402, %v401
    %v467 = vpack.c.b16 %v404, %v403
    %v468 = vpack.c.b16 %v406, %v405
    %v469 = vpack.c.b16 %v408, %v407
    %v470 = vpack.c.b16 %v410, %v409
    %v471 = vpack.c.b16 %v412, %v411
    %v472 = vpack.c.b16 %v414, %v413
    %v473 = vpack.c.b16 %v416, %v415
    %v474 = vpack.c.b16 %v418, %v417
    %v475 = vpack.c.b16 %v420, %v419
    %v476 = vpack.c.b16 %v422, %v421
    %v477 = vpack.c.b16 %v424, %v423
    %v478 = vpack.c.b16 %v426, %v425
    %v479 = vpack.c.b16 %v428, %v427
    %v480 = vpack.c.b16 %v430, %v429
    %v481 = vpack.c.b16 %v432, %v431
    %v482 = vpack.c.b16 %v434, %v433
    %531 = vmatprep.subr.bf16.mxu0 0
    %532 = vmatpush1.bf16.msra.mxu0 %v435
    %533 = vmatprep.subr.bf16.mxu0 0
    %534 = vmatpush1.bf16.msra.mxu0 %v436
    %535 = vmatprep.subr.bf16.mxu0 0
    %536 = vmatpush1.bf16.msra.mxu0 %v437
    %537 = vmatprep.subr.bf16.mxu0 0
    %538 = vmatpush1.bf16.msra.mxu0 %v438
    %539 = vmatprep.subr.bf16.mxu0 0
    %540 = vmatpush1.bf16.msra.mxu0 %v439
    %541 = vmatprep.subr.bf16.mxu0 0
    %542 = vmatpush1.bf16.msra.mxu0 %v440
    %543 = vmatprep.subr.bf16.mxu0 0
    %544 = vmatpush1.bf16.msra.mxu0 %v441
    %545 = vmatprep.subr.bf16.mxu0 0
    %546 = vmatpush1.bf16.msra.mxu0 %v442
    %547 = vmatprep.subr.bf16.mxu0 0
    %548 = vmatpush1.bf16.msra.mxu0 %v443
    %549 = vmatprep.subr.bf16.mxu0 0
    %550 = vmatpush1.bf16.msra.mxu0 %v444
    %551 = vmatprep.subr.bf16.mxu0 0
    %552 = vmatpush1.bf16.msra.mxu0 %v445
    %553 = vmatprep.subr.bf16.mxu0 0
    %554 = vmatpush1.bf16.msra.mxu0 %v446
    %555 = vmatprep.subr.bf16.mxu0 0
    %556 = vmatpush1.bf16.msra.mxu0 %v447
    %557 = vmatprep.subr.bf16.mxu0 0
    %558 = vmatpush1.bf16.msra.mxu0 %v448
    %559 = vmatprep.subr.bf16.mxu0 0
    %560 = vmatpush1.bf16.msra.mxu0 %v449
    %561 = vmatprep.subr.bf16.mxu0 0
    %562 = vmatpush1.bf16.msra.mxu0 %v450
    %563 = vmatprep.mubr.bf16.mxu0 %v232
    %564 = vmatmul.mubr.bf16.gmra.mrb[0].mxu0 %v231
    %v565 = vpop.f32.mrb[0].mxu0
    %v566 = vadd.f32 0.0, %v565
    %v567 = vpop.f32.mrb[0].mxu0
    %v568 = vpop.f32.mrb[0].mxu0
    %v569 = vpop.f32.mrb[0].mxu0
    %570 = vdwg.mxu0
    %571 = vmatprep.subr.bf16.mxu0 0
    %572 = vmatpush1.bf16.msra.mxu0 %v451
    %573 = vmatprep.subr.bf16.mxu0 0
    %574 = vmatpush1.bf16.msra.mxu0 %v452
    %575 = vmatprep.subr.bf16.mxu0 0
    %576 = vmatpush1.bf16.msra.mxu0 %v453
    %577 = vmatprep.subr.bf16.mxu0 0
    %578 = vmatpush1.bf16.msra.mxu0 %v454
    %579 = vmatprep.subr.bf16.mxu0 0
    %580 = vmatpush1.bf16.msra.mxu0 %v455
    %581 = vmatprep.subr.bf16.mxu0 0
    %582 = vmatpush1.bf16.msra.mxu0 %v456
    %583 = vmatprep.subr.bf16.mxu0 0
    %584 = vmatpush1.bf16.msra.mxu0 %v457
    %585 = vmatprep.subr.bf16.mxu0 0
    %586 = vmatpush1.bf16.msra.mxu0 %v458
    %587 = vmatprep.subr.bf16.mxu0 0
    %588 = vmatpush1.bf16.msra.mxu0 %v459
    %589 = vmatprep.subr.bf16.mxu0 0
    %590 = vmatpush1.bf16.msra.mxu0 %v460
    %591 = vmatprep.subr.bf16.mxu0 0
    %592 = vmatpush1.bf16.msra.mxu0 %v461
    %593 = vmatprep.subr.bf16.mxu0 0
    %594 = vmatpush1.bf16.msra.mxu0 %v462
    %595 = vmatprep.subr.bf16.mxu0 0
    %596 = vmatpush1.bf16.msra.mxu0 %v463
    %597 = vmatprep.subr.bf16.mxu0 0
    %598 = vmatpush1.bf16.msra.mxu0 %v464
    %599 = vmatprep.subr.bf16.mxu0 0
    %600 = vmatpush1.bf16.msra.mxu0 %v465
    %601 = vmatprep.subr.bf16.mxu0 0
    %602 = vmatpush1.bf16.msra.mxu0 %v466
    %603 = vmatprep.mubr.bf16.mxu0 %v234
    %604 = vmatmul.mubr.bf16.gmra.mrb[0].mxu0 %v233
    %v605 = vpop.f32.mrb[0].mxu0
    %v606 = vadd.f32 %v566, %v605
    %v607 = vpop.f32.mrb[0].mxu0
    %v608 = vpop.f32.mrb[0].mxu0
    %v609 = vpop.f32.mrb[0].mxu0
    %610 = vdwg.mxu0
    %611 = vmatprep.subr.bf16.mxu0 0
    %612 = vmatpush1.bf16.msra.mxu0 %v467
    %613 = vmatprep.subr.bf16.mxu0 0
    %614 = vmatpush1.bf16.msra.mxu0 %v468
    %615 = vmatprep.subr.bf16.mxu0 0
    %616 = vmatpush1.bf16.msra.mxu0 %v469
    %617 = vmatprep.subr.bf16.mxu0 0
    %618 = vmatpush1.bf16.msra.mxu0 %v470
    %619 = vmatprep.subr.bf16.mxu0 0
    %620 = vmatpush1.bf16.msra.mxu0 %v471
    %621 = vmatprep.subr.bf16.mxu0 0
    %622 = vmatpush1.bf16.msra.mxu0 %v472
    %623 = vmatprep.subr.bf16.mxu0 0
    %624 = vmatpush1.bf16.msra.mxu0 %v473
    %625 = vmatprep.subr.bf16.mxu0 0
    %626 = vmatpush1.bf16.msra.mxu0 %v474
    %627 = vmatprep.subr.bf16.mxu0 0
    %628 = vmatpush1.bf16.msra.mxu0 %v475
    %629 = vmatprep.subr.bf16.mxu0 0
    %630 = vmatpush1.bf16.msra.mxu0 %v476
    %631 = vmatprep.subr.bf16.mxu0 0
    %632 = vmatpush1.bf16.msra.mxu0 %v477
    %633 = vmatprep.subr.bf16.mxu0 0
    %634 = vmatpush1.bf16.msra.mxu0 %v478
    %635 = vmatprep.subr.bf16.mxu0 0
    %636 = vmatpush1.bf16.msra.mxu0 %v479
    %637 = vmatprep.subr.bf16.mxu0 0
    %638 = vmatpush1.bf16.msra.mxu0 %v480
    %639 = vmatprep.subr.bf16.mxu0 0
    %640 = vmatpush1.bf16.msra.mxu0 %v481
    %641 = vmatprep.subr.bf16.mxu0 0
    %642 = vmatpush1.bf16.msra.mxu0 %v482
    %643 = vmatprep.mubr.bf16.mxu0 %v236
    %644 = vmatmul.mubr.bf16.gmra.mrb[0].mxu0 %v235
    %v645 = vpop.f32.mrb[0].mxu0
    %v646 = vadd.f32 %v606, %v645
    %v647 = vpop.f32.mrb[0].mxu0
    %v648 = vpop.f32.mrb[0].mxu0
    %v649 = vpop.f32.mrb[0].mxu0
    %650 = vdwg.mxu0
    %v651 = vld [vmem:[%s3] sm:$0xf]
    %v652 = vld [vmem:[#allocation10] sm:$0xf]
    %v653 = vld [vmem:[#allocation10 + $0x4] sm:$0xf]
    %v654 = vld [vmem:[#allocation10 + $0x8] sm:$0xf]
    %v655 = vld [vmem:[#allocation10 + $0xc] sm:$0xf]
    %v656 = vld [vmem:[#allocation10 + $0x10] sm:$0xf]
    %v657 = vld [vmem:[#allocation10 + $0x14] sm:$0xf]
    %v658 = vld [vmem:[#allocation10 + $0x18] sm:$0xf]
    %v659 = vld [vmem:[#allocation10 + $0x1c] sm:$0xf]
    %v660 = vld [vmem:[#allocation10 + $0x20] sm:$0xf]
    %v661 = vld [vmem:[#allocation10 + $0x24] sm:$0xf]
    %v662 = vld [vmem:[#allocation10 + $0x28] sm:$0xf]
    %v663 = vld [vmem:[#allocation10 + $0x2c] sm:$0xf]
    %v664 = vld [vmem:[#allocation10 + $0x30] sm:$0xf]
    %v665 = vld [vmem:[#allocation10 + $0x34] sm:$0xf]
    %v666 = vld [vmem:[#allocation10 + $0x38] sm:$0xf]
    %v667 = vld [vmem:[#allocation10 + $0x3c] sm:$0xf]
    %v684 = vunpack.c.l.b16 %v652
    %v685 = vunpack.c.l.b16 %v653
    %v686 = vunpack.c.l.b16 %v654
    %v687 = vunpack.c.l.b16 %v655
    %v688 = vunpack.c.l.b16 %v656
    %v689 = vunpack.c.l.b16 %v657
    %v690 = vunpack.c.l.b16 %v658
    %v691 = vunpack.c.l.b16 %v659
    %v692 = vunpack.c.l.b16 %v660
    %v693 = vunpack.c.l.b16 %v661
    %v694 = vunpack.c.l.b16 %v662
    %v695 = vunpack.c.l.b16 %v663
    %v696 = vunpack.c.l.b16 %v664
    %v697 = vunpack.c.l.b16 %v665
    %v698 = vunpack.c.l.b16 %v666
    %v699 = vunpack.c.l.b16 %v667
    %v700 = vpack.c.b16 %v685, %v684
    %v701 = vpack.c.b16 %v687, %v686
    %v702 = vpack.c.b16 %v689, %v688
    %v703 = vpack.c.b16 %v691, %v690
    %v704 = vpack.c.b16 %v693, %v692
    %v705 = vpack.c.b16 %v695, %v694
    %v706 = vpack.c.b16 %v697, %v696
    %v707 = vpack.c.b16 %v699, %v698
    %716 = vmatprep.subr.bf16.mxu0 0
    %717 = vmatpush1.bf16.msra.mxu0 %v700
    %718 = vmatprep.subr.bf16.mxu0 0
    %719 = vmatpush1.bf16.msra.mxu0 %v701
    %720 = vmatprep.subr.bf16.mxu0 0
    %721 = vmatpush1.bf16.msra.mxu0 %v702
    %722 = vmatprep.subr.bf16.mxu0 0
    %723 = vmatpush1.bf16.msra.mxu0 %v703
    %724 = vmatprep.subr.bf16.mxu0 0
    %725 = vmatpush1.bf16.msra.mxu0 %v704
    %726 = vmatprep.subr.bf16.mxu0 0
    %727 = vmatpush1.bf16.msra.mxu0 %v705
    %728 = vmatprep.subr.bf16.mxu0 0
    %729 = vmatpush1.bf16.msra.mxu0 %v706
    %730 = vmatprep.subr.bf16.mxu0 0
    %731 = vmatpush1.bf16.msra.mxu0 %v707
    %732 = vmatprep.subr.bf16.mxu0 0
    %733 = vmatpush1.bf16.msra.mxu0 0
    %734 = vmatprep.subr.bf16.mxu0 0
    %735 = vmatpush1.bf16.msra.mxu0 0
    %736 = vmatprep.subr.bf16.mxu0 0
    %737 = vmatpush1.bf16.msra.mxu0 0
    %738 = vmatprep.subr.bf16.mxu0 0
    %739 = vmatpush1.bf16.msra.mxu0 0
    %740 = vmatprep.subr.bf16.mxu0 0
    %741 = vmatpush1.bf16.msra.mxu0 0
    %742 = vmatprep.subr.bf16.mxu0 0
    %743 = vmatpush1.bf16.msra.mxu0 0
    %744 = vmatprep.subr.bf16.mxu0 0
    %745 = vmatpush1.bf16.msra.mxu0 0
    %746 = vmatprep.subr.bf16.mxu0 0
    %747 = vmatpush1.bf16.msra.mxu0 0
    %748 = vmatprep.mubr.bf16.mxu0 0
    %749 = vmatmul.mubr.bf16.gmra.mrb[0].mxu0 %v651
    %v750 = vpop.f32.mrb[0].mxu0
    %v751 = vadd.f32 0.0, %v750
    %v752 = vpop.f32.mrb[0].mxu0
    %v753 = vpop.f32.mrb[0].mxu0
    %v754 = vpop.f32.mrb[0].mxu0
    %755 = vdwg.mxu0
    %v756 = vld [vmem:[%s5] sm:$0xf]
    %v757 = vld [vmem:[#allocation11] sm:$0xf]
    %v758 = vld [vmem:[#allocation11 + $0x4] sm:$0xf]
    %v759 = vld [vmem:[#allocation11 + $0x8] sm:$0xf]
    %v760 = vld [vmem:[#allocation11 + $0xc] sm:$0xf]
    %v761 = vld [vmem:[#allocation11 + $0x10] sm:$0xf]
    %v762 = vld [vmem:[#allocation11 + $0x14] sm:$0xf]
    %v763 = vld [vmem:[#allocation11 + $0x18] sm:$0xf]
    %v764 = vld [vmem:[#allocation11 + $0x1c] sm:$0xf]
    %v765 = vld [vmem:[#allocation11 + $0x20] sm:$0xf]
    %v766 = vld [vmem:[#allocation11 + $0x24] sm:$0xf]
    %v767 = vld [vmem:[#allocation11 + $0x28] sm:$0xf]
    %v768 = vld [vmem:[#allocation11 + $0x2c] sm:$0xf]
    %v769 = vld [vmem:[#allocation11 + $0x30] sm:$0xf]
    %v770 = vld [vmem:[#allocation11 + $0x34] sm:$0xf]
    %v771 = vld [vmem:[#allocation11 + $0x38] sm:$0xf]
    %v772 = vld [vmem:[#allocation11 + $0x3c] sm:$0xf]
    %v773 = vld [vmem:[%s7] sm:$0xf]
    %v774 = vld [vmem:[%s8] sm:$0x1]
    %s775 = sld [smem:[#allocation3]]
    %v792 = vunpack.c.l.b16 %v757
    %v793 = vunpack.c.l.b16 %v758
    %v794 = vunpack.c.l.b16 %v759
    %v795 = vunpack.c.l.b16 %v760
    %v796 = vunpack.c.l.b16 %v761
    %v797 = vunpack.c.l.b16 %v762
    %v798 = vunpack.c.l.b16 %v763
    %v799 = vunpack.c.l.b16 %v764
    %v800 = vunpack.c.l.b16 %v765
    %v801 = vunpack.c.l.b16 %v766
    %v802 = vunpack.c.l.b16 %v767
    %v803 = vunpack.c.l.b16 %v768
    %v804 = vunpack.c.l.b16 %v769
    %v805 = vunpack.c.l.b16 %v770
    %v806 = vunpack.c.l.b16 %v771
    %v807 = vunpack.c.l.b16 %v772
    %v808 = vpack.c.b16 %v793, %v792
    %v809 = vpack.c.b16 %v795, %v794
    %v810 = vpack.c.b16 %v797, %v796
    %v811 = vpack.c.b16 %v799, %v798
    %v812 = vpack.c.b16 %v801, %v800
    %v813 = vpack.c.b16 %v803, %v802
    %v814 = vpack.c.b16 %v805, %v804
    %v815 = vpack.c.b16 %v807, %v806
    %824 = vmatprep.subr.bf16.mxu0 0
    %825 = vmatpush1.bf16.msra.mxu0 %v808
    %826 = vmatprep.subr.bf16.mxu0 0
    %827 = vmatpush1.bf16.msra.mxu0 %v809
    %828 = vmatprep.subr.bf16.mxu0 0
    %829 = vmatpush1.bf16.msra.mxu0 %v810
    %830 = vmatprep.subr.bf16.mxu0 0
    %831 = vmatpush1.bf16.msra.mxu0 %v811
    %832 = vmatprep.subr.bf16.mxu0 0
    %833 = vmatpush1.bf16.msra.mxu0 %v812
    %834 = vmatprep.subr.bf16.mxu0 0
    %835 = vmatpush1.bf16.msra.mxu0 %v813
    %836 = vmatprep.subr.bf16.mxu0 0
    %837 = vmatpush1.bf16.msra.mxu0 %v814
    %838 = vmatprep.subr.bf16.mxu0 0
    %839 = vmatpush1.bf16.msra.mxu0 %v815
    %840 = vmatprep.subr.bf16.mxu0 0
    %841 = vmatpush1.bf16.msra.mxu0 0
    %842 = vmatprep.subr.bf16.mxu0 0
    %843 = vmatpush1.bf16.msra.mxu0 0
    %844 = vmatprep.subr.bf16.mxu0 0
    %845 = vmatpush1.bf16.msra.mxu0 0
    %846 = vmatprep.subr.bf16.mxu0 0
    %847 = vmatpush1.bf16.msra.mxu0 0
    %848 = vmatprep.subr.bf16.mxu0 0
    %849 = vmatpush1.bf16.msra.mxu0 0
    %850 = vmatprep.subr.bf16.mxu0 0
    %851 = vmatpush1.bf16.msra.mxu0 0
    %852 = vmatprep.subr.bf16.mxu0 0
    %853 = vmatpush1.bf16.msra.mxu0 0
    %854 = vmatprep.subr.bf16.mxu0 0
    %855 = vmatpush1.bf16.msra.mxu0 0
    %856 = vmatprep.mubr.bf16.mxu0 0
    %857 = vmatmul.mubr.bf16.gmra.mrb[0].mxu0 %v756
    %v858 = vpop.f32.mrb[0].mxu0
    %v859 = vadd.f32 0.0, %v858
    %v860 = vpop.f32.mrb[0].mxu0
    %v861 = vpop.f32.mrb[0].mxu0
    %v862 = vpop.f32.mrb[0].mxu0
    %863 = vdwg.mxu0
    %v864 = vpack.c.bf16 %v859, %v859
    %v866 = vlaneseq
    %v867 = vshrl.u32 %v866, 7
    %v868 = vsub.s32 0, %v867
    %v869 = vrot.slane %v774, %v868
    %vm871 = vcmask 64512
    %v873 = vsel %vm871, %v773, 0
    %vm875 = vcmask 1043456
    %v877 = vsel %vm875, %v864, 0
    %879 = vmatprep.subr.bf16.mxu0 0
    %880 = vmatpush1.bf16.msra.mxu0 %v877
    %881 = vmatprep.subr.bf16.mxu0 0
    %882 = vmatpush1.bf16.msra.mxu0 0
    %883 = vmatprep.subr.bf16.mxu0 0
    %884 = vmatpush1.bf16.msra.mxu0 0
    %885 = vmatprep.subr.bf16.mxu0 0
    %886 = vmatpush1.bf16.msra.mxu0 0
    %887 = vmatprep.subr.bf16.mxu0 0
    %888 = vmatpush1.bf16.msra.mxu0 0
    %889 = vmatprep.subr.bf16.mxu0 0
    %890 = vmatpush1.bf16.msra.mxu0 0
    %891 = vmatprep.subr.bf16.mxu0 0
    %892 = vmatpush1.bf16.msra.mxu0 0
    %893 = vmatprep.subr.bf16.mxu0 0
    %894 = vmatpush1.bf16.msra.mxu0 0
    %895 = vmatprep.subr.bf16.mxu0 0
    %896 = vmatpush1.bf16.msra.mxu0 0
    %897 = vmatprep.subr.bf16.mxu0 0
    %898 = vmatpush1.bf16.msra.mxu0 0
    %899 = vmatprep.subr.bf16.mxu0 0
    %900 = vmatpush1.bf16.msra.mxu0 0
    %901 = vmatprep.subr.bf16.mxu0 0
    %902 = vmatpush1.bf16.msra.mxu0 0
    %903 = vmatprep.subr.bf16.mxu0 0
    %904 = vmatpush1.bf16.msra.mxu0 0
    %905 = vmatprep.subr.bf16.mxu0 0
    %906 = vmatpush1.bf16.msra.mxu0 0
    %907 = vmatprep.subr.bf16.mxu0 0
    %908 = vmatpush1.bf16.msra.mxu0 0
    %909 = vmatprep.subr.bf16.mxu0 0
    %910 = vmatpush1.bf16.msra.mxu0 0
    %911 = vmatprep.mubr.bf16.mxu0 0
    %912 = vmatmul.mubr.bf16.gmra.mrb[0].mxu0 %v873
    %v913 = vpop.f32.mrb[0].mxu0
    %v914 = vadd.f32 %v869, %v913
    %v915 = vpop.f32.mrb[0].mxu0
    %v916 = vpop.f32.mrb[0].mxu0
    %v917 = vpop.f32.mrb[0].mxu0
    %918 = vdwg.mxu0
    %vm919 = vcmp.ge.f32.partialorder %v914, 0.0
    %v920 = vstv %s775
    %v921 = vmul.f32 %v920, %v914
    %v922 = vsel %vm919, %v914, %v921
    %v923 = vld [vmem:[%s9] sm:$0xf]
    %v924 = vld [vmem:[#allocation13] sm:$0xf]
    %v925 = vld [vmem:[#allocation13 + $0x4] sm:$0xf]
    %v926 = vld [vmem:[#allocation13 + $0x8] sm:$0xf]
    %v927 = vld [vmem:[#allocation13 + $0xc] sm:$0xf]
    %v928 = vld [vmem:[#allocation13 + $0x10] sm:$0xf]
    %v929 = vld [vmem:[#allocation13 + $0x14] sm:$0xf]
    %v930 = vld [vmem:[#allocation13 + $0x18] sm:$0xf]
    %v931 = vld [vmem:[#allocation13 + $0x1c] sm:$0xf]
    %v932 = vld [vmem:[#allocation13 + $0x20] sm:$0xf]
    %v933 = vld [vmem:[#allocation13 + $0x24] sm:$0xf]
    %v934 = vld [vmem:[#allocation13 + $0x28] sm:$0xf]
    %v935 = vld [vmem:[#allocation13 + $0x2c] sm:$0xf]
    %v936 = vld [vmem:[#allocation13 + $0x30] sm:$0xf]
    %v937 = vld [vmem:[#allocation13 + $0x34] sm:$0xf]
    %v938 = vld [vmem:[#allocation13 + $0x38] sm:$0xf]
    %v939 = vld [vmem:[#allocation13 + $0x3c] sm:$0xf]
    %v940 = vld [vmem:[%s11] sm:$0xf]
    %v941 = vld [vmem:[%s12] sm:$0x1]
    %s942 = sld [smem:[#allocation3 + $0x1]]
    %v959 = vunpack.c.l.b16 %v924
    %v960 = vunpack.c.l.b16 %v925
    %v961 = vunpack.c.l.b16 %v926
    %v962 = vunpack.c.l.b16 %v927
    %v963 = vunpack.c.l.b16 %v928
    %v964 = vunpack.c.l.b16 %v929
    %v965 = vunpack.c.l.b16 %v930
    %v966 = vunpack.c.l.b16 %v931
    %v967 = vunpack.c.l.b16 %v932
    %v968 = vunpack.c.l.b16 %v933
    %v969 = vunpack.c.l.b16 %v934
    %v970 = vunpack.c.l.b16 %v935
    %v971 = vunpack.c.l.b16 %v936
    %v972 = vunpack.c.l.b16 %v937
    %v973 = vunpack.c.l.b16 %v938
    %v974 = vunpack.c.l.b16 %v939
    %v975 = vpack.c.b16 %v960, %v959
    %v976 = vpack.c.b16 %v962, %v961
    %v977 = vpack.c.b16 %v964, %v963
    %v978 = vpack.c.b16 %v966, %v965
    %v979 = vpack.c.b16 %v968, %v967
    %v980 = vpack.c.b16 %v970, %v969
    %v981 = vpack.c.b16 %v972, %v971
    %v982 = vpack.c.b16 %v974, %v973
    %991 = vmatprep.subr.bf16.mxu0 0
    %992 = vmatpush1.bf16.msra.mxu0 %v975
    %993 = vmatprep.subr.bf16.mxu0 0
    %994 = vmatpush1.bf16.msra.mxu0 %v976
    %995 = vmatprep.subr.bf16.mxu0 0
    %996 = vmatpush1.bf16.msra.mxu0 %v977
    %997 = vmatprep.subr.bf16.mxu0 0
    %998 = vmatpush1.bf16.msra.mxu0 %v978
    %999 = vmatprep.subr.bf16.mxu0 0
    %1000 = vmatpush1.bf16.msra.mxu0 %v979
    %1001 = vmatprep.subr.bf16.mxu0 0
    %1002 = vmatpush1.bf16.msra.mxu0 %v980
    %1003 = vmatprep.subr.bf16.mxu0 0
    %1004 = vmatpush1.bf16.msra.mxu0 %v981
    %1005 = vmatprep.subr.bf16.mxu0 0
    %1006 = vmatpush1.bf16.msra.mxu0 %v982
    %1007 = vmatprep.subr.bf16.mxu0 0
    %1008 = vmatpush1.bf16.msra.mxu0 0
    %1009 = vmatprep.subr.bf16.mxu0 0
    %1010 = vmatpush1.bf16.msra.mxu0 0
    %1011 = vmatprep.subr.bf16.mxu0 0
    %1012 = vmatpush1.bf16.msra.mxu0 0
    %1013 = vmatprep.subr.bf16.mxu0 0
    %1014 = vmatpush1.bf16.msra.mxu0 0
    %1015 = vmatprep.subr.bf16.mxu0 0
    %1016 = vmatpush1.bf16.msra.mxu0 0
    %1017 = vmatprep.subr.bf16.mxu0 0
    %1018 = vmatpush1.bf16.msra.mxu0 0
    %1019 = vmatprep.subr.bf16.mxu0 0
    %1020 = vmatpush1.bf16.msra.mxu0 0
    %1021 = vmatprep.subr.bf16.mxu0 0
    %1022 = vmatpush1.bf16.msra.mxu0 0
    %1023 = vmatprep.mubr.bf16.mxu0 0
    %1024 = vmatmul.mubr.bf16.gmra.mrb[0].mxu0 %v923
    %v1025 = vpop.f32.mrb[0].mxu0
    %v1026 = vadd.f32 0.0, %v1025
    %v1027 = vpop.f32.mrb[0].mxu0
    %v1028 = vpop.f32.mrb[0].mxu0
    %v1029 = vpop.f32.mrb[0].mxu0
    %1030 = vdwg.mxu0
    %v1031 = vpack.c.bf16 %v1026, %v1026
    %v1033 = vlaneseq
    %v1034 = vshrl.u32 %v1033, 7
    %v1035 = vsub.s32 0, %v1034
    %v1036 = vrot.slane %v941, %v1035
    %v1039 = vsel %vm871, %v940, 0
    %v1042 = vsel %vm875, %v1031, 0
    %1044 = vmatprep.subr.bf16.mxu0 0
    %1045 = vmatpush1.bf16.msra.mxu0 %v1042
    %1046 = vmatprep.subr.bf16.mxu0 0
    %1047 = vmatpush1.bf16.msra.mxu0 0
    %1048 = vmatprep.subr.bf16.mxu0 0
    %1049 = vmatpush1.bf16.msra.mxu0 0
    %1050 = vmatprep.subr.bf16.mxu0 0
    %1051 = vmatpush1.bf16.msra.mxu0 0
    %1052 = vmatprep.subr.bf16.mxu0 0
    %1053 = vmatpush1.bf16.msra.mxu0 0
    %1054 = vmatprep.subr.bf16.mxu0 0
    %1055 = vmatpush1.bf16.msra.mxu0 0
    %1056 = vmatprep.subr.bf16.mxu0 0
    %1057 = vmatpush1.bf16.msra.mxu0 0
    %1058 = vmatprep.subr.bf16.mxu0 0
    %1059 = vmatpush1.bf16.msra.mxu0 0
    %1060 = vmatprep.subr.bf16.mxu0 0
    %1061 = vmatpush1.bf16.msra.mxu0 0
    %1062 = vmatprep.subr.bf16.mxu0 0
    %1063 = vmatpush1.bf16.msra.mxu0 0
    %1064 = vmatprep.subr.bf16.mxu0 0
    %1065 = vmatpush1.bf16.msra.mxu0 0
    %1066 = vmatprep.subr.bf16.mxu0 0
    %1067 = vmatpush1.bf16.msra.mxu0 0
    %1068 = vmatprep.subr.bf16.mxu0 0
    %1069 = vmatpush1.bf16.msra.mxu0 0
    %1070 = vmatprep.subr.bf16.mxu0 0
    %1071 = vmatpush1.bf16.msra.mxu0 0
    %1072 = vmatprep.subr.bf16.mxu0 0
    %1073 = vmatpush1.bf16.msra.mxu0 0
    %1074 = vmatprep.subr.bf16.mxu0 0
    %1075 = vmatpush1.bf16.msra.mxu0 0
    %1076 = vmatprep.mubr.bf16.mxu0 0
    %1077 = vmatmul.mubr.bf16.gmra.mrb[0].mxu0 %v1039
    %v1078 = vpop.f32.mrb[0].mxu0
    %v1079 = vadd.f32 %v1036, %v1078
    %v1080 = vpop.f32.mrb[0].mxu0
    %v1081 = vpop.f32.mrb[0].mxu0
    %v1082 = vpop.f32.mrb[0].mxu0
    %1083 = vdwg.mxu0
    %vm1084 = vcmp.ge.f32.partialorder %v1079, 0.0
    %v1085 = vstv %s942
    %v1086 = vmul.f32 %v1085, %v1079
    %v1087 = vsel %vm1084, %v1079, %v1086
    %v1088 = vmul.f32 %v922, 0.7
    %v1089 = vmul.f32 %v1087, 0.3
    %v1090 = vadd.f32 %v1088, %v1089
    %v1091 = vmul.f32 %v751, 0.6
    %v1092 = vmul.f32 %v1090, 0.4
    %v1093 = vadd.f32 %v1091, %v1092
    %s1094 = sld [smem:[#allocation3 + $0x2]]
    %v1095 = vstv %s1094
    %v1096 = vmul.f32 %v1095, 1.442695
    %v1097 = vpow.pop %v1096
    %s1098 = vtos %v1097
    %v1099 = vmul.f32 %v646, %v646
    %1100 = vadd.xlane.f32.xlu0 %v1099
    %v1101 = vpop.xlane.xlu0 %1100
    %v1102 = vadd.f32 %v1101, 1e-12
    %v1103 = vrsqrt.pop %v1102
    %v1104 = vstv %s1098
    %v1105 = vmul.f32 %v1104, %v1103
    %v1106 = vmul.f32 %v646, %v1105
    %v1107 = vmul.f32 %v1093, %v1093
    %1108 = vadd.xlane.f32.xlu0 %v1107
    %v1109 = vpop.xlane.xlu0 %1108
    %v1110 = vadd.f32 %v1109, 1e-12
    %v1111 = vrsqrt.pop %v1110
    %v1112 = vmul.f32 %v1093, %v1111
    %1113 = vst [vmem:[#allocation2] sm:$0xff] 0.0
    %1114 = vst [vmem:[#allocation2 + $0x8] sm:$0xff] 0.0
    %1115 = vst [vmem:[#allocation2 + $0x10] sm:$0xff] 0.0
    %1116 = vst [vmem:[#allocation2 + $0x18] sm:$0xff] 0.0
    %1117 = vst [vmem:[#allocation2 + $0x20] sm:$0xff] 0.0
    %1118 = vst [vmem:[#allocation2 + $0x28] sm:$0xff] 0.0
    %1119 = vst [vmem:[#allocation2 + $0x30] sm:$0xff] 0.0
    %1120 = vst [vmem:[#allocation2 + $0x38] sm:$0xff] 0.0
    %1121 = vst [vmem:[#allocation2 + $0x40] sm:$0xff] 0.0
    %1122 = vst [vmem:[#allocation2 + $0x48] sm:$0xff] 0.0
    %1123 = vst [vmem:[#allocation2 + $0x50] sm:$0xff] 0.0
    %1124 = vst [vmem:[#allocation2 + $0x58] sm:$0xff] 0.0
    %1125 = vst [vmem:[#allocation2 + $0x60] sm:$0xff] 0.0
    %1126 = vst [vmem:[#allocation2 + $0x68] sm:$0xff] 0.0
    %1127 = vst [vmem:[#allocation2 + $0x70] sm:$0xff] 0.0
    %1128 = vst [vmem:[#allocation2 + $0x78] sm:$0xff] 0.0
    %1129 = vst [vmem:[#allocation2] sm:$0xff] %v1112
    %v1130 = vld [vmem:[#allocation2] sm:$0xff]
    %v1131 = vld [vmem:[#allocation2 + $0x8] sm:$0xff]
    %v1132 = vld [vmem:[#allocation2 + $0x10] sm:$0xff]
    %v1133 = vld [vmem:[#allocation2 + $0x18] sm:$0xff]
    %v1134 = vld [vmem:[#allocation2 + $0x20] sm:$0xff]
    %v1135 = vld [vmem:[#allocation2 + $0x28] sm:$0xff]
    %v1136 = vld [vmem:[#allocation2 + $0x30] sm:$0xff]
    %v1137 = vld [vmem:[#allocation2 + $0x38] sm:$0xff]
    %v1138 = vld [vmem:[#allocation2 + $0x40] sm:$0xff]
    %v1139 = vld [vmem:[#allocation2 + $0x48] sm:$0xff]
    %v1140 = vld [vmem:[#allocation2 + $0x50] sm:$0xff]
    %v1141 = vld [vmem:[#allocation2 + $0x58] sm:$0xff]
    %v1142 = vld [vmem:[#allocation2 + $0x60] sm:$0xff]
    %v1143 = vld [vmem:[#allocation2 + $0x68] sm:$0xff]
    %v1144 = vld [vmem:[#allocation2 + $0x70] sm:$0xff]
    %v1145 = vld [vmem:[#allocation2 + $0x78] sm:$0xff]
    %1146 = vmatprep.subr.mxu0 0.0
    %1147 = vmatpush1.xpose.msra.mxu0 %v1130
    %1148 = vmatprep.subr.mxu0 0.0
    %1149 = vmatpush1.xpose.msra.mxu0 %v1131
    %1150 = vmatprep.subr.mxu0 0.0
    %1151 = vmatpush1.xpose.msra.mxu0 %v1132
    %1152 = vmatprep.subr.mxu0 0.0
    %1153 = vmatpush1.xpose.msra.mxu0 %v1133
    %1154 = vmatprep.subr.mxu0 0.0
    %1155 = vmatpush1.xpose.msra.mxu0 %v1134
    %1156 = vmatprep.subr.mxu0 0.0
    %1157 = vmatpush1.xpose.msra.mxu0 %v1135
    %1158 = vmatprep.subr.mxu0 0.0
    %1159 = vmatpush1.xpose.msra.mxu0 %v1136
    %1160 = vmatprep.subr.mxu0 0.0
    %1161 = vmatpush1.xpose.msra.mxu0 %v1137
    %1162 = vmatprep.subr.mxu0 0.0
    %1163 = vmatpush1.xpose.msra.mxu0 %v1138
    %1164 = vmatprep.subr.mxu0 0.0
    %1165 = vmatpush1.xpose.msra.mxu0 %v1139
    %1166 = vmatprep.subr.mxu0 0.0
    %1167 = vmatpush1.xpose.msra.mxu0 %v1140
    %1168 = vmatprep.subr.mxu0 0.0
    %1169 = vmatpush1.xpose.msra.mxu0 %v1141
    %1170 = vmatprep.subr.mxu0 0.0
    %1171 = vmatpush1.xpose.msra.mxu0 %v1142
    %1172 = vmatprep.subr.mxu0 0.0
    %1173 = vmatpush1.xpose.msra.mxu0 %v1143
    %1174 = vmatprep.subr.mxu0 0.0
    %1175 = vmatpush1.xpose.msra.mxu0 %v1144
    %1176 = vmatprep.subr.mxu0 0.0
    %1177 = vmatpush1.xpose.msra.mxu0 %v1145
    %1178 = vmatprep.subr.mxu0 0.0
    %1179 = vmatpush1.xpose.msra.mxu0 0.0
    %1180 = vmatprep.subr.mxu0 0.0
    %1181 = vmatpush1.xpose.msra.mxu0 0.0
    %1182 = vmatprep.subr.mxu0 0.0
    %1183 = vmatpush1.xpose.msra.mxu0 0.0
    %1184 = vmatprep.subr.mxu0 0.0
    %1185 = vmatpush1.xpose.msra.mxu0 0.0
    %1186 = vmatprep.subr.mxu0 0.0
    %1187 = vmatpush1.xpose.msra.mxu0 0.0
    %1188 = vmatprep.subr.mxu0 0.0
    %1189 = vmatpush1.xpose.msra.mxu0 0.0
    %1190 = vmatprep.subr.mxu0 0.0
    %1191 = vmatpush1.xpose.msra.mxu0 0.0
    %1192 = vmatprep.subr.mxu0 0.0
    %1193 = vmatpush1.xpose.msra.mxu0 0.0
    %1194 = vmatprep.subr.mxu0 0.0
    %1195 = vmatpush1.xpose.msra.mxu0 0.0
    %1196 = vmatprep.subr.mxu0 0.0
    %1197 = vmatpush1.xpose.msra.mxu0 0.0
    %1198 = vmatprep.subr.mxu0 0.0
    %1199 = vmatpush1.xpose.msra.mxu0 0.0
    %1200 = vmatprep.subr.mxu0 0.0
    %1201 = vmatpush1.xpose.msra.mxu0 0.0
    %1202 = vmatprep.subr.mxu0 0.0
    %1203 = vmatpush1.xpose.msra.mxu0 0.0
    %1204 = vmatprep.subr.mxu0 0.0
    %1205 = vmatpush1.xpose.msra.mxu0 0.0
    %1206 = vmatprep.subr.mxu0 0.0
    %1207 = vmatpush1.xpose.msra.mxu0 0.0
    %1208 = vmatprep.subr.mxu0 0.0
    %1209 = vmatpush1.xpose.msra.mxu0 0.0
    %1210 = vmatprep.mubr.f32.mxu0 0.0
    %1211 = vmatmul.mubr.f32.gmra.mrb[0].mxu0 %v1106
    %v1212 = vpop.f32.mrb[0].mxu0
    %v1213 = vadd.f32 0.0, %v1212
    %v1214 = vpop.f32.mrb[0].mxu0
    %1215 = vdwg.mxu0
    %1216 = vst [vmem:[#allocation14] sm:$0xff] %v1213
    // Predicated region
    $region78: #{tpu_custom_call.1} parent=1 // pred_check
      _
    $region79: #{tpu_custom_call.1} parent=1 // pred_check_branch
      %1218 = sbr.rel (0) target = $region81
    $region80: #{tpu_custom_call.1} parent=1 // pred_region
      %s1220 = ssub.s32 128, 128
      %1221 = vsyncadd [#allocation5], %s1220
      %s1223 = sshll.u32 [#allocation14], 4
      %s1224 = int_to_ptr.vmem [resolvable:$true] %s1223
      %1226 = dma.vmem_to_hbm [thread:$0]  %s1224, 128, %s13, [#allocation5]
    $region81: #{tpu_custom_call.1} parent=1 // pred_fallthru
      _
    // Predicated region
    $region82: #{tpu_custom_call.1} parent=1 // pred_check
      _
    $region83: #{tpu_custom_call.1} parent=1 // pred_check_branch
      %1228 = sbr.rel (0) target = $region85
    $region84: #{tpu_custom_call.1} parent=1 // pred_region
      %1229 = dma.done [#allocation5], 128
    $region85: #{tpu_custom_call.1} parent=1 // pred_fallthru
      _
    %1230 = vsyncpa [#allocation4], 1
    %1231 = vsyncpa [#allocation9], 1
    %1232 = vsyncpa [#allocation12], 1
    %1233 = vsyncpa [#allocation5], 1
    %1234 = vsyncpa [#allocation6], 1

</llo_original>
